<compile_context>
chip_gen: v7x
topology: tpu7x:2x2x1
jax: 0.10.0
libtpu: 0.0.40
codegen_flags: <defaults>
</compile_context>

<pallas_src>
import functools

import jax
import jax.numpy as jnp
from jax import lax
from jax.experimental import pallas as pl
from jax.experimental.pallas import tpu as pltpu


def _ls_ce_kernel(x_ref, t_ref, o_ref, acc_ref, *, smoothing: float,
                  n_rows: int, tile_rows: int):
    i = pl.program_id(0)
    n_tiles = pl.num_programs(0)

    @pl.when(i == 0)
    def _init():
        acc_ref[0, 0] = jnp.float32(0.0)

    x = x_ref[...].astype(jnp.float32)            # (TN, C) f32 working copy
    t = t_ref[...]                                # (TN, 1) int32 labels
    tn, c = x.shape

    # Row-wise stable log-sum-exp.
    m = jnp.max(x, axis=1, keepdims=True)                               # (TN,1)
    lse = jnp.log(jnp.sum(jnp.exp(x - m), axis=1, keepdims=True)) + m   # (TN,1)

    # Fused weighted row reduction:
    #   sum_c x * (smoothing/C + confidence*[c == y]) = confidence*x_y
    #                                                 + (smoothing/C)*sum_c x
    confidence = 1.0 - smoothing
    sc = smoothing / c
    col = lax.broadcasted_iota(jnp.int32, (tn, c), 1)                   # (TN,C)
    w = jnp.where(col == t, confidence + sc, sc)                        # (TN,C)
    wx = jnp.sum(w * x, axis=1, keepdims=True)                          # (TN,1)

    per_row = lse - wx                                                  # (TN,1)

    # Mask padded tail rows (when N % TN != 0) out of the partial sum.
    row = i * tile_rows + lax.broadcasted_iota(jnp.int32, (tn, 1), 0)   # (TN,1)
    tile_sum = jnp.sum(jnp.where(row < n_rows, per_row, 0.0))

    acc_ref[0, 0] += tile_sum

    @pl.when(i == n_tiles - 1)
    def _finalize():
        # 1/N folded into the scalar epilogue; divisor is the true N.
        o_ref[0, 0] = acc_ref[0, 0] * (1.0 / n_rows)


def _pick_row_tile(n: int, c: int, itemsize: int,
                   budget_bytes: int = 8 << 20) -> int:
    """Pick a row tile that keeps the double-buffered working set small enough
    for v7x's 64 MiB VMEM (32 MiB scoped default) with plenty of headroom."""
    # per row: native-dtype input tile + f32 temporaries, x2 double buffer,
    # plus the lane-padded (TN,128) int32 label block.
    bytes_per_row = 2 * c * (itemsize + 4) + 2 * 128 * 4
    tn = budget_bytes // max(bytes_per_row, 1)
    tn = int(max(8, min(512, tn)) // 8 * 8)       # multiple of 8 (sublane)
    if n <= tn:
        return n                                  # single tile == full array
    return tn


def label_smoothing_cross_entropy(x, target, smoothing: float = 0.1,
                                  row_tile: int | None = None):
    """x: (N, C) logits in native dtype; target: (N,) int labels.
    Returns the scalar float32 label-smoothing cross-entropy loss."""
    assert 0.0 < smoothing < 1.0
    n, c = x.shape
    t = target.astype(jnp.int32).reshape(n, 1)

    tn = row_tile if row_tile is not None else _pick_row_tile(
        n, c, x.dtype.itemsize)
    if tn < n:
        assert tn % 8 == 0, "row tile must be a multiple of 8"
    n_tiles = pl.cdiv(n, tn)

    kernel = functools.partial(
        _ls_ce_kernel, smoothing=float(smoothing), n_rows=n, tile_rows=tn)

    cost = pl.CostEstimate(
        flops=6 * n * c,                 # max/sub/exp-add/select/mul/sum chain
        transcendentals=n * c,           # exp (+ one log per row, negligible)
        bytes_accessed=n * c * x.dtype.itemsize + n * 4 + 4,
    )

    # Explicit VMEM limit: double-buffered tile working set plus headroom,
    # capped well under v7x's 64 MiB physical VMEM.
    vmem_needed = 2 * (tn * c * (x.dtype.itemsize + 4) + tn * 128 * 4)
    vmem_limit = int(min(max(2 * vmem_needed, 4 << 20), 32 << 20))

    out = pl.pallas_call(
        kernel,
        out_shape=jax.ShapeDtypeStruct((1, 1), jnp.float32),
        grid_spec=pltpu.PrefetchScalarGridSpec(
            num_scalar_prefetch=0,
            grid=(n_tiles,),
            in_specs=[
                pl.BlockSpec((tn, c), lambda i: (i, 0)),   # logits row tile
                pl.BlockSpec((tn, 1), lambda i: (i, 0)),   # labels row tile
            ],
            # Scalar result lives in SMEM: no masked 1-lane VMEM store.
            out_specs=pl.BlockSpec(memory_space=pltpu.MemorySpace.SMEM),
            scratch_shapes=[pltpu.SMEM((1, 1), jnp.float32)],  # accumulator
        ),
        compiler_params=pltpu.CompilerParams(
            dimension_semantics=("arbitrary",),   # reduction over row tiles
            vmem_limit_bytes=vmem_limit,
        ),
        cost_estimate=cost,
    )(x, t)                                       # native dtype, no f32 copy
    return out[0, 0]


def _reference(x, target, smoothing=0.1):
    # Pure-JAX reference mirroring the torch loss literally.
    confidence = 1.0 - smoothing
    y_hat = jax.nn.softmax(x.astype(jnp.float32), axis=1)
    n = x.shape[0]
    cross_loss = -jnp.log(y_hat[jnp.arange(n), target])
    smooth_loss = -jnp.log(y_hat).mean(axis=1)
    loss = confidence * cross_loss + smoothing * smooth_loss
    return loss.mean()


if __name__ == "__main__":
    key = jax.random.PRNGKey(0)
    kx, kt = jax.random.split(key)

    # Small shapes; N deliberately NOT a multiple of the explicit row tile to
    # exercise the multi-tile accumulation + padded-tail masking path.
    N, C = 12, 32
    x = jax.random.normal(kx, (N, C), dtype=jnp.float32)
    target = jax.random.randint(kt, (N,), 0, C, dtype=jnp.int32)

    ref = _reference(x, target, smoothing=0.1)

    # Multi-tile path (2 tiles of 8 rows, last tile partially padded).
    loss = jax.block_until_ready(
        label_smoothing_cross_entropy(x, target, smoothing=0.1, row_tile=8))
    assert jnp.allclose(loss, ref, rtol=1e-5, atol=1e-5), (loss, ref)

    # Auto-tiled (single-tile) path.
    loss2 = jax.block_until_ready(
        label_smoothing_cross_entropy(x, target, smoothing=0.1))
    assert jnp.allclose(loss2, ref, rtol=1e-5, atol=1e-5), (loss2, ref)

    # Native bf16 logits path (kernel reads bf16, computes in f32).
    x_bf16 = x.astype(jnp.bfloat16)
    ref_bf16 = _reference(x_bf16, target, smoothing=0.1)
    loss3 = jax.block_until_ready(
        label_smoothing_cross_entropy(x_bf16, target, smoothing=0.1))
    assert jnp.allclose(loss3, ref_bf16, rtol=1e-3, atol=1e-3), (loss3, ref_bf16)

    print("KERNEL_OK")
</pallas_src>

<mosaic_0001>
module attributes {stable_mosaic.version = 11 : i64} {
  func.func @_ls_ce_kernel(%arg0: i32, %arg1: memref<8x32xf32, #tpu.memory_space<vmem>>, %arg2: memref<8x1xi32, #tpu.memory_space<vmem>>, %arg3: memref<1x1xf32, #tpu.memory_space<smem>>, %arg4: memref<1x1xf32, #tpu.memory_space<smem>>) attributes {dimension_semantics = [#tpu.dimension_semantics<arbitrary>], iteration_bounds = array<i64: 2>, scalar_prefetch = 0 : i64, scratch_operands = 1 : i64, tpu.core_type = #tpu.core_type<tc>, window_params = [{transform_indices = @transform_0, window_bounds = array<i64: 8, 32>}, {transform_indices = @transform_1, window_bounds = array<i64: 8, 1>}, {transform_indices = @transform_2, window_bounds = array<i64: 1, 1>}]} {
    %c0_i32 = arith.constant 0 : i32
    %0 = arith.cmpi eq, %arg0, %c0_i32 : i32
    %1 = arith.extui %0 : i1 to i32
    %c0_i32_0 = arith.constant 0 : i32
    %2 = arith.cmpi ne, %1, %c0_i32_0 : i32
    scf.if %2 {
      %cst_15 = arith.constant 0.000000e+00 : f32
      %c0_16 = arith.constant 0 : index
      %c0_17 = arith.constant 0 : index
      %42 = memref.load %arg4[%c0_16, %c0_17] : memref<1x1xf32, #tpu.memory_space<smem>>
      memref.store %cst_15, %arg4[%c0_16, %c0_17] : memref<1x1xf32, #tpu.memory_space<smem>>
    } else {
    }
    %c0 = arith.constant 0 : index
    %c0_1 = arith.constant 0 : index
    %3 = vector.load %arg1[%c0, %c0_1] : memref<8x32xf32, #tpu.memory_space<vmem>>, vector<8x32xf32>
    %c0_2 = arith.constant 0 : index
    %c0_3 = arith.constant 0 : index
    %4 = vector.load %arg2[%c0_2, %c0_3] : memref<8x1xi32, #tpu.memory_space<vmem>>, vector<8x1xi32>
    %cst = arith.constant dense<0xFF800000> : vector<8xf32>
    %5 = vector.multi_reduction <maximumf>, %3, %cst [1] : vector<8x32xf32> to vector<8xf32>
    %6 = vector.shape_cast %5 : vector<8xf32> to vector<8x1xf32>
    %7 = vector.broadcast %6 : vector<8x1xf32> to vector<8x32xf32>
    %8 = arith.subf %3, %7 : vector<8x32xf32>
    %9 = math.exp %8 : vector<8x32xf32>
    %cst_4 = arith.constant dense<0.000000e+00> : vector<8xf32>
    %10 = vector.multi_reduction <add>, %9, %cst_4 [1] : vector<8x32xf32> to vector<8xf32>
    %11 = vector.shape_cast %10 : vector<8xf32> to vector<8x1xf32>
    %12 = math.log %11 : vector<8x1xf32>
    %13 = arith.addf %12, %6 : vector<8x1xf32>
    %14 = tpu.iota {dimensions = array<i32: 1>} : vector<8x32xi32>
    %15 = vector.broadcast %4 : vector<8x1xi32> to vector<8x32xi32>
    %16 = arith.cmpi eq, %14, %15 : vector<8x32xi32>
    %cst_5 = arith.constant 0.903124988 : f32
    %cst_6 = arith.constant 3.125000e-03 : f32
    %17 = vector.broadcast %cst_5 : f32 to vector<8x32xf32>
    %18 = vector.broadcast %cst_6 : f32 to vector<8x32xf32>
    %19 = arith.select %16, %17, %18 : vector<8x32xi1>, vector<8x32xf32>
    %20 = arith.mulf %19, %3 : vector<8x32xf32>
    %cst_7 = arith.constant dense<0.000000e+00> : vector<8xf32>
    %21 = vector.multi_reduction <add>, %20, %cst_7 [1] : vector<8x32xf32> to vector<8xf32>
    %22 = vector.shape_cast %21 : vector<8xf32> to vector<8x1xf32>
    %23 = arith.subf %13, %22 : vector<8x1xf32>
    %c8_i32 = arith.constant 8 : i32
    %24 = arith.muli %arg0, %c8_i32 : i32
    %25 = tpu.iota {dimensions = array<i32: 0>} : vector<8x1xi32>
    %26 = vector.broadcast %24 : i32 to vector<8x1xi32>
    %27 = arith.addi %26, %25 : vector<8x1xi32>
    %c12_i32 = arith.constant 12 : i32
    %28 = vector.broadcast %c12_i32 : i32 to vector<8x1xi32>
    %29 = arith.cmpi slt, %27, %28 : vector<8x1xi32>
    %cst_8 = arith.constant 0.000000e+00 : f32
    %30 = vector.broadcast %cst_8 : f32 to vector<8x1xf32>
    %31 = arith.select %29, %23, %30 : vector<8x1xi1>, vector<8x1xf32>
    %32 = vector.shape_cast %31 : vector<8x1xf32> to vector<1x8x1xf32>
    %cst_9 = arith.constant dense<0.000000e+00> : vector<1xf32>
    %33 = vector.multi_reduction <add>, %32, %cst_9 [1, 2] : vector<1x8x1xf32> to vector<1xf32>
    %34 = vector.shape_cast %33 : vector<1xf32> to vector<1x1x1xf32>
    %35 = vector.extract %34[0, 0, 0] : f32 from vector<1x1x1xf32>
    %c0_10 = arith.constant 0 : index
    %c0_11 = arith.constant 0 : index
    %36 = memref.load %arg4[%c0_10, %c0_11] : memref<1x1xf32, #tpu.memory_space<smem>>
    %37 = arith.addf %36, %35 : f32
    %c0_12 = arith.constant 0 : index
    %c0_13 = arith.constant 0 : index
    %38 = memref.load %arg4[%c0_12, %c0_13] : memref<1x1xf32, #tpu.memory_space<smem>>
    memref.store %37, %arg4[%c0_12, %c0_13] : memref<1x1xf32, #tpu.memory_space<smem>>
    %c1_i32 = arith.constant 1 : i32
    %39 = arith.cmpi eq, %arg0, %c1_i32 : i32
    %40 = arith.extui %39 : i1 to i32
    %c0_i32_14 = arith.constant 0 : i32
    %41 = arith.cmpi ne, %40, %c0_i32_14 : i32
    scf.if %41 {
      %c0_15 = arith.constant 0 : index
      %c0_16 = arith.constant 0 : index
      %42 = memref.load %arg4[%c0_15, %c0_16] : memref<1x1xf32, #tpu.memory_space<smem>>
      %cst_17 = arith.constant 0.0833333358 : f32
      %43 = arith.mulf %42, %cst_17 : f32
      %c0_18 = arith.constant 0 : index
      %c0_19 = arith.constant 0 : index
      %44 = memref.load %arg3[%c0_18, %c0_19] : memref<1x1xf32, #tpu.memory_space<smem>>
      memref.store %43, %arg3[%c0_18, %c0_19] : memref<1x1xf32, #tpu.memory_space<smem>>
    } else {
    }
    return
  }
  func.func @transform_0(%arg0: i32) -> (i32, i32) {
    %c0_i32 = arith.constant 0 : i32
    %c0_i32_0 = arith.constant 0 : i32
    return %arg0, %c0_i32 : i32, i32
  }
  func.func @transform_1(%arg0: i32) -> (i32, i32) {
    %c0_i32 = arith.constant 0 : i32
    %c0_i32_0 = arith.constant 0 : i32
    return %arg0, %c0_i32 : i32, i32
  }
  func.func @transform_2(%arg0: i32) -> (i32, i32) {
    %c0_i32 = arith.constant 0 : i32
    %c0_i32_0 = arith.constant 0 : i32
    %c0_i32_1 = arith.constant 0 : i32
    return %c0_i32, %c0_i32_0 : i32, i32
  }
}

</mosaic_0001>

<llo_original>
// kernel: tpu_custom_call.1
$region0: #{tpu_custom_call.1}
  #allocation0 [shape = 'u32[]', space=smem, size = 0x4, offset = 0x4, fixed_abs, tag = 'smem constant byte address 0x4 - core index']
  #allocation1 [shape = 'u32[144,128]{1,0:T(1,128)}', space=vmem, size = 0x12000, scoped, tag = 'internal scratch']
  #allocation2 [shape = 'f32[1,1]{1,0:T(1,128)}', space=smem, size = 0x200, scoped, tag = 'scratch operand']
  %s0 = inlined_call_operand.vmem [shape: f32[12,32], index: 0, kind: input, shape index: {}]
  %s1 = inlined_call_operand.vmem [shape: s32[12,1], index: 1, kind: input, shape index: {}]
  %s2 = inlined_call_operand.hbm [shape: f32[1,1], index: 2, kind: output, shape index: {}]
  %s3 = sld [smem:[#allocation0]]
  $region49: #{tpu_custom_call.1} parent=0
    _
  %s5 = ssub.s32 1, %s3
  %s6 = scalar_select 0, %s5, %s3
  $region1: #{tpu_custom_call.1} parent=0
    #allocation3 [shape = 'u8[512]{0}', space=smem, size = 0x200, scoped, tag = 'output window, operand 0, single buffered']
    #allocation4 [shape = 's32[2]{0}', space=sflag, size = 0x8, scoped, tag = 'scoped memory for tpu_custom_call.1']
    %7 = vsyncpa [#allocation4], 0
    loop: start=0, step=1, limit=4
    $region2: #{tpu_custom_call.1} parent=1 // loop_pre_header
      _
    $region3: #{tpu_custom_call.1} parent=1 // loop_header
      %s9 = sphi 0, %s13
      %p10 = scmp.ge.s32.totalorder %s9, 4
      %s19 = sphi 0, %s21
      %s22 = sphi 0, %s19
      %s23 = sphi 0, %s22
      %s39 = sphi 0, %s23
      %s45 = sphi 0, %s47
      %s48 = sphi 0, %s45
      %s49 = sphi 0, %s48
      %s65 = sphi 0, %s49
      %s69 = sphi 0, %s69
      %s71 = sphi 0, %s69
      %s72 = sphi 0, %s71
      %s86 = sphi 0, %s72
    $region4: #{tpu_custom_call.1} parent=1 // loop_header_branch
      %12 = sbr.rel (%p10) target = $region8
    $region5: #{tpu_custom_call.1} parent=1 // loop_body
      %s14 = ssub.s32 %s9, 1
      %s15 = ssub.s32 %s9, 2
      %s16 = sadd.s32 %s9, 1
      %s17 = ssub.s32 %s9, %s16
      %p18 = scmp.eq.s32.totalorder %s17, 0
      %s20 = sadd.s32 %s19, 1
      %s21 = scalar_select %p18, %s19, %s20
      %p24 = pneg %p18
      %p25 = scmp.eq.s32.totalorder %s9, 1
      %p26 = por %p24, %p25
      %p27 = scmp.ne.s32.totalorder %s19, %s22
      %p28 = scmp.eq.s32.totalorder %s9, 0
      %p29 = por %p27, %p28
      %p30 = scmp.ne.s32.totalorder %s19, %s22
      %p31 = scmp.eq.s32.totalorder %s14, 1
      %p32 = por %p30, %p31
      %p33 = scmp.ne.s32.totalorder %s22, %s23
      %p34 = scmp.eq.s32.totalorder %s14, 0
      %p35 = por %p33, %p34
      %p36 = scmp.ne.s32.totalorder %s22, %s23
      %p37 = scmp.eq.s32.totalorder %s15, 1
      %p38 = por %p36, %p37
      %p40 = scmp.ne.s32.totalorder %s23, %s39
      %p41 = scmp.eq.s32.totalorder %s15, 0
      %p42 = por %p40, %p41
      %s43 = ssub.s32 %s9, %s16
      %p44 = scmp.eq.s32.totalorder %s43, 0
      %s46 = sadd.s32 %s45, 1
      %s47 = scalar_select %p44, %s45, %s46
      %p50 = pneg %p44
      %p51 = scmp.eq.s32.totalorder %s9, 1
      %p52 = por %p50, %p51
      %p53 = scmp.ne.s32.totalorder %s45, %s48
      %p54 = scmp.eq.s32.totalorder %s9, 0
      %p55 = por %p53, %p54
      %p56 = scmp.ne.s32.totalorder %s45, %s48
      %p57 = scmp.eq.s32.totalorder %s14, 1
      %p58 = por %p56, %p57
      %p59 = scmp.ne.s32.totalorder %s48, %s49
      %p60 = scmp.eq.s32.totalorder %s14, 0
      %p61 = por %p59, %p60
      %p62 = scmp.ne.s32.totalorder %s48, %s49
      %p63 = scmp.eq.s32.totalorder %s15, 1
      %p64 = por %p62, %p63
      %p66 = scmp.ne.s32.totalorder %s49, %s65
      %p67 = scmp.eq.s32.totalorder %s15, 0
      %p68 = por %p66, %p67
      %s70 = sadd.s32 %s69, 1
      %p73 = scmp.eq.s32.totalorder %s9, 1
      %p74 = scmp.ne.s32.totalorder %s69, %s71
      %p75 = scmp.eq.s32.totalorder %s9, 0
      %p76 = por %p74, %p75
      %p77 = scmp.ne.s32.totalorder %s69, %s71
      %p78 = scmp.eq.s32.totalorder %s14, 1
      %p79 = por %p77, %p78
      %p80 = scmp.ne.s32.totalorder %s71, %s72
      %p81 = scmp.eq.s32.totalorder %s14, 0
      %p82 = por %p80, %p81
      %p83 = scmp.ne.s32.totalorder %s71, %s72
      %p84 = scmp.eq.s32.totalorder %s15, 1
      %p85 = por %p83, %p84
      %p87 = scmp.ne.s32.totalorder %s72, %s86
      %p88 = scmp.eq.s32.totalorder %s15, 0
      %p89 = por %p87, %p88
      %p90 = scmp.le.s32.totalorder 1, %s9
      %p91 = scmp.lt.s32.totalorder %s9, 3
      %p92 = pnand %p90, %p91
      %p93 = pneg %p92
      // Predicated region
      $region9: #{tpu_custom_call.1} parent=5 // pred_check
        _
      $region10: #{tpu_custom_call.1} parent=5 // pred_check_branch
        %95 = sbr.rel (%p92) target = $region12
      $region11: #{tpu_custom_call.1} parent=5 // pred_region
        %s96 = ssub.s32 %s9, 1
      $region12: #{tpu_custom_call.1} parent=5 // pred_fallthru
        _
      %p97 = scmp.lt.s32.totalorder %s9, 2
      // Predicated region
      $region13: #{tpu_custom_call.1} parent=5 // pred_check
        %p98 = pneg %p97
      $region14: #{tpu_custom_call.1} parent=5 // pred_check_branch
        %100 = sbr.rel (%p98) target = $region16
      $region15: #{tpu_custom_call.1} parent=5 // pred_region
        // Predicated region
        $region17: #{tpu_custom_call.1} parent=15 // pred_check
          %p101 = pneg %p29
        $region18: #{tpu_custom_call.1} parent=15 // pred_check_branch
          %103 = sbr.rel (%p101) target = $region20
        $region19: #{tpu_custom_call.1} parent=15 // pred_region
          %p104 = scmp.lt.s32.totalorder %s9, 1
          %s105 = scalar_select %p104, %s9, 1
          %s106 = smul.addr %s105, 8
          %s107 = scalar_lea.vmem %s0, %s106
        $region20: #{tpu_custom_call.1} parent=15 // pred_fallthru
          _
        // Predicated region
        $region21: #{tpu_custom_call.1} parent=15 // pred_check
          %p108 = pneg %p55
        $region22: #{tpu_custom_call.1} parent=15 // pred_check_branch
          %110 = sbr.rel (%p108) target = $region24
        $region23: #{tpu_custom_call.1} parent=15 // pred_region
          %p111 = scmp.lt.s32.totalorder %s9, 1
          %s112 = scalar_select %p111, %s9, 1
          %s113 = smul.addr %s112, 8
          %s114 = scalar_lea.vmem %s1, %s113
        $region24: #{tpu_custom_call.1} parent=15 // pred_fallthru
          _
      $region16: #{tpu_custom_call.1} parent=5 // pred_fallthru
        _
      %p115 = scmp.le.s32.totalorder 1, %s9
      %p116 = scmp.lt.s32.totalorder %s9, 3
      %p117 = pnand %p115, %p116
      %p118 = pneg %p117
      // Predicated region
      $region25: #{tpu_custom_call.1} parent=5 // pred_check
        _
      $region26: #{tpu_custom_call.1} parent=5 // pred_check_branch
        %120 = sbr.rel (%p117) target = $region28
      $region27: #{tpu_custom_call.1} parent=5 // pred_region
        %s121 = ssub.s32 %s9, 1
        %p122 = scmp.lt.s32.totalorder %s14, 1
        %s123 = scalar_select %p122, %s14, 1
        %s124 = smul.addr %s123, 8
        %s125 = scalar_lea.vmem %s0, %s124
        %p126 = pneg %p35
        %p127 = pneg %p32
        %p128 = scmp.lt.s32.totalorder %s14, 1
        %s129 = scalar_select %p128, %s14, 1
        %s130 = smul.addr %s129, 8
        %s131 = scalar_lea.vmem %s1, %s130
        %p132 = pneg %p61
        %p133 = pneg %p58
        %p134 = pneg %p82
        %p135 = pneg %p79
        %p136 = scmp.lt.s32.totalorder %s14, 1
        %s137 = scalar_select %p136, %s14, 1
        %s138 = smul.addr %s137, 8
        %s139 = scalar_lea.vmem %s0, %s138
        %p140 = scmp.lt.s32.totalorder %s14, 1
        %s141 = scalar_select %p140, %s14, 1
        %s142 = smul.addr %s141, 8
        %s143 = scalar_lea.vmem %s1, %s142
        %p144 = scmp.eq.s32.totalorder %s14, 0
        // Predicated region
        $region29: #{tpu_custom_call.1} parent=27 // pred_check
          %p145 = pneg %p144
        $region30: #{tpu_custom_call.1} parent=27 // pred_check_branch
          %147 = sbr.rel (%p145) target = $region32
        $region31: #{tpu_custom_call.1} parent=27 // pred_region
          %s148 = scalar_lea.smem [#allocation2], 0
          %149 = sst [smem:[%s148]] 0.0
        $region32: #{tpu_custom_call.1} parent=27 // pred_fallthru
          _
        %v150 = vld [vmem:[%s139] sm:$0xff]
        %v151 = vld [vmem:[%s143] sm:$0xff]
        %vm152 = vcmask 261120
        %v153 = vsel %vm152, %v150, -inf
        %154 = vmax.xlane.f32.xlu0 %v153
        %v155 = vpop.xlane.xlu0 %154
        %v156 = vsub.f32 %v150, %v155
        %v157 = vmul.f32 %v156, 1.442695
        %v158 = vpow.pop %v157
        %v159 = vsel %vm152, %v158, 0.0
        %160 = vadd.xlane.f32.xlu0 %v159
        %v161 = vpop.xlane.xlu0 %160
        %v162 = vlog2.pop %v161
        %v163 = vmul.f32 %v162, 0.6931472
        %v164 = vadd.f32 %v163, %v155
        %v165 = vlaneseq
        %v166 = vand.u32 %v165, 127
        %167 = vset.pattern.permute.xlu0 0
        %168 = vperm.xlu0 %167, %v151
        %v169 = vpop.permute.xlu0 %168
        %vm170 = vcmp.eq.s32.totalorder %v166, %v169
        %v171 = vsel %vm170, 0.903125, 0.003125
        %v172 = vmul.f32 %v171, %v150
        %v173 = vsel %vm152, %v172, 0.0
        %174 = vadd.xlane.f32.xlu0 %v173
        %v175 = vpop.xlane.xlu0 %174
        %v176 = vsub.f32 %v164, %v175
        %s177 = smul.u32 %s14, 8
        %v178 = vlaneseq
        %v179 = vshrl.u32 %v178, 7
        %v180 = vstv %s177
        %v181 = vadd.s32 %v180, %v179
        %vm182 = vcmp.lt.s32.totalorder %v181, 12
        %v183 = vsel %vm182, %v176, 0.0
        %vm184 = vcmask 7168
        %v185 = vsel %vm184, %v183, 0.0
        %186 = vadd.xlane.f32.xlu0 %v185
        %v187 = vpop.xlane.xlu0 %186
        %v188 = vrot.slane %v187, 4
        %v189 = vadd.f32 %v187, %v188
        %v190 = vrot.slane %v189, 2
        %v191 = vadd.f32 %v189, %v190
        %v192 = vrot.slane %v191, 1
        %v193 = vadd.f32 %v191, %v192
        %s194 = vtos %v193
        %s195 = sld [smem:[#allocation2]]
        %s196 = sadd.f32 %s195, %s194
        %s197 = scalar_lea.smem [#allocation2], 0
        %198 = sst [smem:[%s197]] %s196
        %p199 = scmp.eq.s32.totalorder %s14, 1
        // Predicated region
        $region33: #{tpu_custom_call.1} parent=27 // pred_check
          %p200 = pneg %p199
        $region34: #{tpu_custom_call.1} parent=27 // pred_check_branch
          %202 = sbr.rel (%p200) target = $region36
        $region35: #{tpu_custom_call.1} parent=27 // pred_region
          %s203 = sld [smem:[#allocation2]]
          %s204 = smul.f32 %s203, 0.083333336
          %s205 = scalar_lea.smem [#allocation3], 0
          %206 = sst [smem:[%s205]] %s204
        $region36: #{tpu_custom_call.1} parent=27 // pred_fallthru
          _
        // Predicated region
        $region37: #{tpu_custom_call.1} parent=27 // pred_check
          %p207 = pneg %p79
        $region38: #{tpu_custom_call.1} parent=27 // pred_check_branch
          %209 = sbr.rel (%p207) target = $region40
        $region39: #{tpu_custom_call.1} parent=27 // pred_region
          %s211 = ssub.s32 16, 16
          %212 = vsyncadd [#allocation4], %s211
          %215 = dma.smem_to_hbm [#allocation3], 16, %s2, [#allocation4]
        $region40: #{tpu_custom_call.1} parent=27 // pred_fallthru
          _
        // Predicated region
        $region41: #{tpu_custom_call.1} parent=27 // pred_check
          %p216 = pneg %p79
        $region42: #{tpu_custom_call.1} parent=27 // pred_check_branch
          %218 = sbr.rel (%p216) target = $region44
        $region43: #{tpu_custom_call.1} parent=27 // pred_region
          %219 = dma.done [#allocation4], 16
        $region44: #{tpu_custom_call.1} parent=27 // pred_fallthru
          _
        %220 = sfence
      $region28: #{tpu_custom_call.1} parent=5 // pred_fallthru
        _
      %p221 = scmp.le.s32.totalorder 2, %s9
      // Predicated region
      $region45: #{tpu_custom_call.1} parent=5 // pred_check
        %p222 = pneg %p221
      $region46: #{tpu_custom_call.1} parent=5 // pred_check_branch
        %224 = sbr.rel (%p222) target = $region48
      $region47: #{tpu_custom_call.1} parent=5 // pred_region
        %s225 = ssub.s32 %s9, 2
      $region48: #{tpu_custom_call.1} parent=5 // pred_fallthru
        _
    $region6: #{tpu_custom_call.1} parent=1 // loop_footer
      %s13 = sadd.s32 1, %s9
    $region7: #{tpu_custom_call.1} parent=1 // loop_footer_branch
      %8 = sbr.rel target = $region3
    $region8: #{tpu_custom_call.1} parent=1 // loop_exit
      _
    %226 = vsyncpa [#allocation4], 1
    %s227 = scalar_lea.sflag [#allocation4], 1
    %228 = vsyncpa %s227, 1

</llo_original>
